<compile_context>
chip_gen: v5e
topology: v5e:2x2
jax: 0.10.0
libtpu: 0.0.40
codegen_flags: <defaults>
</compile_context>

<pallas_src>
import jax
import jax.numpy as jnp
from jax.experimental import pallas as pl
from jax.experimental.pallas import tpu as pltpu

_LANE = 128
_SUBLANE = 8


def _round_up(n: int, m: int) -> int:
    return ((n + m - 1) // m) * m


def agent_kernel(slopes_ref, x_ref, w1_ref, w2_ref, w3_ref, b_ref, o_ref):
    """One batch tile: L2-normalize -> Linear+PReLU -> Linear+PReLU -> Linear."""
    x = x_ref[...]  # (TB, obs) f32

    # F.normalize(x, dim=1): x / max(||x||_2, 1e-12)  ==  x * rsqrt(max(||x||^2, 1e-24)).
    # rsqrt lowers to the EUP slot, off the VPU critical path.
    s = jnp.sum(x * x, axis=1, keepdims=True)
    x = x * jax.lax.rsqrt(jnp.maximum(s, 1e-24))

    # Scalar PReLU slopes read from SMEM on the scalar unit.
    a1 = slopes_ref[0]
    a2 = slopes_ref[1]

    hid_p = w1_ref.shape[1]
    act_p = w3_ref.shape[1]

    # Linear 1 + PReLU  (static slices of the packed bias table are free views)
    h = jnp.dot(x, w1_ref[...], preferred_element_type=jnp.float32)
    h = h + b_ref[0:1, 0:hid_p]
    h = jnp.where(h >= 0.0, h, a1 * h)

    # Linear 2 + PReLU
    h = jnp.dot(h, w2_ref[...], preferred_element_type=jnp.float32)
    h = h + b_ref[1:2, 0:hid_p]
    h = jnp.where(h >= 0.0, h, a2 * h)

    # Linear 3 (output head) — lane-dense store (act_p is a multiple of 128).
    out = jnp.dot(h, w3_ref[...], preferred_element_type=jnp.float32)
    out = out + b_ref[2:3, 0:act_p]
    o_ref[...] = out.astype(o_ref.dtype)


def prepare_params(params):
    """Pre-transpose weights to (in, out), zero-pad hidden/action widths to lane
    multiples, and pack the small constants.  Do this ONCE, outside the hot path."""
    w1, b1, a1 = params["w1"], params["b1"], params["a1"]
    w2, b2, a2 = params["w2"], params["b2"], params["a2"]
    w3, b3 = params["w3"], params["b3"]

    hid, obs = w1.shape
    act = w3.shape[0]
    hid_p = _round_up(hid, _LANE)
    act_p = _round_up(act, _LANE)
    pad_w = max(hid_p, act_p)

    def pad2(w, rows, cols):
        out = jnp.zeros((rows, cols), jnp.float32)
        return out.at[: w.shape[0], : w.shape[1]].set(w.astype(jnp.float32))

    w1p = pad2(w1.T, obs, hid_p)    # (obs,   hid_p)
    w2p = pad2(w2.T, hid_p, hid_p)  # (hid_p, hid_p)
    w3p = pad2(w3.T, hid_p, act_p)  # (hid_p, act_p)

    bias_pack = jnp.zeros((3, pad_w), jnp.float32)
    bias_pack = bias_pack.at[0, :hid].set(b1.astype(jnp.float32))
    bias_pack = bias_pack.at[1, :hid].set(b2.astype(jnp.float32))
    bias_pack = bias_pack.at[2, :act].set(b3.astype(jnp.float32))

    slopes = jnp.stack([jnp.asarray(a1, jnp.float32).reshape(()),
                        jnp.asarray(a2, jnp.float32).reshape(())])  # (2,) SMEM

    return {"w1": w1p, "w2": w2p, "w3": w3p, "bias": bias_pack, "slopes": slopes,
            "obs": obs, "hid": hid, "act": act, "hid_p": hid_p, "act_p": act_p}


def agent_forward(x, pp, *, tb_max=1024):
    """x: (B, obs) array.  pp: output of prepare_params.  Returns (B, act) f32."""
    B, obs = x.shape
    assert obs == pp["obs"], "observation size mismatch"
    hid_p, act_p = pp["hid_p"], pp["act_p"]
    pad_w = pp["bias"].shape[1]

    # Batch tile: biggest that is still tiny vs VMEM (double-buffered x/out tiles
    # are 2*TB*(obs+act_p)*4B ≈ 1.2 MiB at TB=1024 — safe on v5e/v6e/v7x).
    TB = min(tb_max, _round_up(B, _SUBLANE))
    B_pad = _round_up(B, TB)

    xf = x.astype(jnp.float32)
    if B_pad != B:
        xf = jnp.pad(xf, ((0, B_pad - B), (0, 0)))

    out = pl.pallas_call(
        agent_kernel,
        out_shape=jax.ShapeDtypeStruct((B_pad, act_p), jnp.float32),
        grid=(B_pad // TB,),
        in_specs=[
            # scalar PReLU slopes -> SMEM (no padded VMEM tile, no vector load)
            pl.BlockSpec(memory_space=pltpu.MemorySpace.SMEM),
            # x tile: pipelined over the batch grid
            pl.BlockSpec((TB, obs), lambda i: (i, 0)),
            # weights + packed biases: resident in VMEM across all grid steps
            pl.BlockSpec((obs, hid_p), lambda i: (0, 0)),
            pl.BlockSpec((hid_p, hid_p), lambda i: (0, 0)),
            pl.BlockSpec((hid_p, act_p), lambda i: (0, 0)),
            pl.BlockSpec((3, pad_w), lambda i: (0, 0)),
        ],
        out_specs=pl.BlockSpec((TB, act_p), lambda i: (i, 0)),
        compiler_params=pltpu.CompilerParams(
            dimension_semantics=("parallel",),      # shard batch tiles across TCs (v7x)
            vmem_limit_bytes=32 * 1024 * 1024,      # well within v7x's 64 MiB physical
        ),
    )(pp["slopes"], xf, pp["w1"], pp["w2"], pp["w3"], pp["bias"])

    return out[:B, : pp["act"]]


def init_params(key, obs_size, hidden_size, action_size):
    """Deterministic init mimicking nn.Linear defaults (uniform +/- 1/sqrt(fan_in))
    and nn.PReLU default slope 0.25."""
    ks = jax.random.split(key, 6)

    def linear(kw, kb, fan_in, fan_out):
        bound = 1.0 / jnp.sqrt(fan_in)
        w = jax.random.uniform(kw, (fan_out, fan_in), jnp.float32, -bound, bound)
        b = jax.random.uniform(kb, (fan_out,), jnp.float32, -bound, bound)
        return w, b

    w1, b1 = linear(ks[0], ks[1], obs_size, hidden_size)
    w2, b2 = linear(ks[2], ks[3], hidden_size, hidden_size)
    w3, b3 = linear(ks[4], ks[5], hidden_size, action_size)
    return {"w1": w1, "b1": b1, "a1": jnp.array(0.25, jnp.float32),
            "w2": w2, "b2": b2, "a2": jnp.array(0.25, jnp.float32),
            "w3": w3, "b3": b3}


def reference_forward(x, p):
    """Pure-JAX reference of the PyTorch forward, for validation."""
    x = x.astype(jnp.float32)
    norm = jnp.sqrt(jnp.sum(x * x, axis=1, keepdims=True))
    x = x / jnp.maximum(norm, 1e-12)

    def prelu(h, a):
        return jnp.where(h >= 0.0, h, a * h)

    h = prelu(x @ p["w1"].T + p["b1"], p["a1"])
    h = prelu(h @ p["w2"].T + p["b2"], p["a2"])
    return h @ p["w3"].T + p["b3"]


if __name__ == "__main__":
    # Small shapes consistent with the module: observation=16, hidden=32, actions=4.
    batch, obs_size, hidden_size, action_size = 8, 16, 32, 4

    key = jax.random.PRNGKey(0)
    k_x, k_p = jax.random.split(key)
    x = jax.random.normal(k_x, (batch, obs_size), jnp.float32)
    params = init_params(k_p, obs_size, hidden_size, action_size)

    pp = prepare_params(params)          # one-time transpose / pad / pack
    out = agent_forward(x, pp)
    out = jax.block_until_ready(out)

    ref = reference_forward(x, params)
    assert out.shape == (batch, action_size)
    assert jnp.allclose(out, ref, atol=1e-4, rtol=1e-5), "mismatch vs reference"

    print("KERNEL_OK")
</pallas_src>

<mosaic_0001>
module attributes {stable_mosaic.version = 11 : i64} {
  func.func @agent_kernel(%arg0: i32, %arg1: memref<2xf32, #tpu.memory_space<smem>>, %arg2: memref<8x16xf32, #tpu.memory_space<vmem>>, %arg3: memref<16x128xf32, #tpu.memory_space<vmem>>, %arg4: memref<128x128xf32, #tpu.memory_space<vmem>>, %arg5: memref<128x128xf32, #tpu.memory_space<vmem>>, %arg6: memref<3x128xf32, #tpu.memory_space<vmem>>, %arg7: memref<8x128xf32, #tpu.memory_space<vmem>>) attributes {dimension_semantics = [#tpu.dimension_semantics<parallel>], iteration_bounds = array<i64: 1>, scalar_prefetch = 0 : i64, scratch_operands = 0 : i64, tpu.core_type = #tpu.core_type<tc>, window_params = [{transform_indices = @transform_0, window_bounds = array<i64: 2>}, {transform_indices = @transform_1, window_bounds = array<i64: 8, 16>}, {pipeline_mode = #tpu.pipeline_mode<synchronous>, transform_indices = @transform_2, window_bounds = array<i64: 16, 128>}, {pipeline_mode = #tpu.pipeline_mode<synchronous>, transform_indices = @transform_3, window_bounds = array<i64: 128, 128>}, {pipeline_mode = #tpu.pipeline_mode<synchronous>, transform_indices = @transform_4, window_bounds = array<i64: 128, 128>}, {pipeline_mode = #tpu.pipeline_mode<synchronous>, transform_indices = @transform_5, window_bounds = array<i64: 3, 128>}, {transform_indices = @transform_6, window_bounds = array<i64: 8, 128>}]} {
    %c0 = arith.constant 0 : index
    %c0_0 = arith.constant 0 : index
    %0 = vector.load %arg2[%c0, %c0_0] : memref<8x16xf32, #tpu.memory_space<vmem>>, vector<8x16xf32>
    %1 = arith.mulf %0, %0 : vector<8x16xf32>
    %cst = arith.constant dense<0.000000e+00> : vector<8xf32>
    %2 = vector.multi_reduction <add>, %1, %cst [1] : vector<8x16xf32> to vector<8xf32>
    %3 = vector.shape_cast %2 : vector<8xf32> to vector<8x1xf32>
    %cst_1 = arith.constant 1.000000e-24 : f32
    %4 = vector.broadcast %cst_1 : f32 to vector<8x1xf32>
    %5 = arith.maximumf %3, %4 : vector<8x1xf32>
    %6 = math.rsqrt %5 : vector<8x1xf32>
    %7 = vector.broadcast %6 : vector<8x1xf32> to vector<8x16xf32>
    %8 = arith.mulf %0, %7 : vector<8x16xf32>
    %c0_2 = arith.constant 0 : index
    %9 = memref.load %arg1[%c0_2] : memref<2xf32, #tpu.memory_space<smem>>
    %c1 = arith.constant 1 : index
    %10 = memref.load %arg1[%c1] : memref<2xf32, #tpu.memory_space<smem>>
    %c0_3 = arith.constant 0 : index
    %c0_4 = arith.constant 0 : index
    %11 = vector.load %arg3[%c0_3, %c0_4] : memref<16x128xf32, #tpu.memory_space<vmem>>, vector<16x128xf32>
    %cst_5 = arith.constant dense<0.000000e+00> : vector<8x128xf32>
    %12 = tpu.matmul %8, %11, %cst_5 {dimension_numbers = #tpu.dot_dimension_numbers<[1], [0], [0], [1], [0, 0, 1, 1], [], []>} : vector<8x16xf32>, vector<16x128xf32>, vector<8x128xf32> -> vector<8x128xf32>
    %c0_6 = arith.constant 0 : index
    %c0_7 = arith.constant 0 : index
    %13 = vector.load %arg6[%c0_6, %c0_7] : memref<3x128xf32, #tpu.memory_space<vmem>>, vector<1x128xf32>
    %14 = vector.broadcast %13 : vector<1x128xf32> to vector<8x128xf32>
    %15 = arith.addf %12, %14 : vector<8x128xf32>
    %cst_8 = arith.constant 0.000000e+00 : f32
    %16 = vector.broadcast %cst_8 : f32 to vector<8x128xf32>
    %17 = arith.cmpf oge, %15, %16 : vector<8x128xf32>
    %18 = vector.broadcast %9 : f32 to vector<8x128xf32>
    %19 = arith.mulf %18, %15 : vector<8x128xf32>
    %20 = arith.select %17, %15, %19 : vector<8x128xi1>, vector<8x128xf32>
    %c0_9 = arith.constant 0 : index
    %c0_10 = arith.constant 0 : index
    %21 = vector.load %arg4[%c0_9, %c0_10] : memref<128x128xf32, #tpu.memory_space<vmem>>, vector<128x128xf32>
    %cst_11 = arith.constant dense<0.000000e+00> : vector<8x128xf32>
    %22 = tpu.matmul %20, %21, %cst_11 {dimension_numbers = #tpu.dot_dimension_numbers<[1], [0], [0], [1], [0, 0, 1, 1], [], []>} : vector<8x128xf32>, vector<128x128xf32>, vector<8x128xf32> -> vector<8x128xf32>
    %c1_12 = arith.constant 1 : index
    %c0_13 = arith.constant 0 : index
    %23 = vector.load %arg6[%c1_12, %c0_13] : memref<3x128xf32, #tpu.memory_space<vmem>>, vector<1x128xf32>
    %24 = vector.broadcast %23 : vector<1x128xf32> to vector<8x128xf32>
    %25 = arith.addf %22, %24 : vector<8x128xf32>
    %cst_14 = arith.constant 0.000000e+00 : f32
    %26 = vector.broadcast %cst_14 : f32 to vector<8x128xf32>
    %27 = arith.cmpf oge, %25, %26 : vector<8x128xf32>
    %28 = vector.broadcast %10 : f32 to vector<8x128xf32>
    %29 = arith.mulf %28, %25 : vector<8x128xf32>
    %30 = arith.select %27, %25, %29 : vector<8x128xi1>, vector<8x128xf32>
    %c0_15 = arith.constant 0 : index
    %c0_16 = arith.constant 0 : index
    %31 = vector.load %arg5[%c0_15, %c0_16] : memref<128x128xf32, #tpu.memory_space<vmem>>, vector<128x128xf32>
    %cst_17 = arith.constant dense<0.000000e+00> : vector<8x128xf32>
    %32 = tpu.matmul %30, %31, %cst_17 {dimension_numbers = #tpu.dot_dimension_numbers<[1], [0], [0], [1], [0, 0, 1, 1], [], []>} : vector<8x128xf32>, vector<128x128xf32>, vector<8x128xf32> -> vector<8x128xf32>
    %c2 = arith.constant 2 : index
    %c0_18 = arith.constant 0 : index
    %33 = vector.load %arg6[%c2, %c0_18] : memref<3x128xf32, #tpu.memory_space<vmem>>, vector<1x128xf32>
    %34 = vector.broadcast %33 : vector<1x128xf32> to vector<8x128xf32>
    %35 = arith.addf %32, %34 : vector<8x128xf32>
    %c0_19 = arith.constant 0 : index
    %c0_20 = arith.constant 0 : index
    %36 = vector.load %arg7[%c0_19, %c0_20] : memref<8x128xf32, #tpu.memory_space<vmem>>, vector<8x128xf32>
    tpu.vector_store %arg7[%c0_19, %c0_20], %35 {strides = array<i32>} : memref<8x128xf32, #tpu.memory_space<vmem>>, vector<8x128xf32>,
    return
  }
  func.func @transform_0(%arg0: i32) -> i32 {
    %c0_i32 = arith.constant 0 : i32
    %c0_i32_0 = arith.constant 0 : i32
    return %c0_i32 : i32
  }
  func.func @transform_1(%arg0: i32) -> (i32, i32) {
    %c0_i32 = arith.constant 0 : i32
    %c0_i32_0 = arith.constant 0 : i32
    return %arg0, %c0_i32 : i32, i32
  }
  func.func @transform_2(%arg0: i32) -> (i32, i32) {
    %c0_i32 = arith.constant 0 : i32
    %c0_i32_0 = arith.constant 0 : i32
    %c0_i32_1 = arith.constant 0 : i32
    return %c0_i32, %c0_i32_0 : i32, i32
  }
  func.func @transform_3(%arg0: i32) -> (i32, i32) {
    %c0_i32 = arith.constant 0 : i32
    %c0_i32_0 = arith.constant 0 : i32
    %c0_i32_1 = arith.constant 0 : i32
    return %c0_i32, %c0_i32_0 : i32, i32
  }
  func.func @transform_4(%arg0: i32) -> (i32, i32) {
    %c0_i32 = arith.constant 0 : i32
    %c0_i32_0 = arith.constant 0 : i32
    %c0_i32_1 = arith.constant 0 : i32
    return %c0_i32, %c0_i32_0 : i32, i32
  }
  func.func @transform_5(%arg0: i32) -> (i32, i32) {
    %c0_i32 = arith.constant 0 : i32
    %c0_i32_0 = arith.constant 0 : i32
    %c0_i32_1 = arith.constant 0 : i32
    return %c0_i32, %c0_i32_0 : i32, i32
  }
  func.func @transform_6(%arg0: i32) -> (i32, i32) {
    %c0_i32 = arith.constant 0 : i32
    %c0_i32_0 = arith.constant 0 : i32
    return %arg0, %c0_i32 : i32, i32
  }
}

</mosaic_0001>

<llo_original>
// kernel: tpu_custom_call.1
$region0: #{tpu_custom_call.1}
  #allocation0 [shape = 'u32[]', space=smem, size = 0x4, offset = 0x4, fixed_abs, tag = 'smem constant byte address 0x4 - core index']
  #allocation1 [shape = 'u32[72,128]{1,0:T(1,128)}', space=vmem, size = 0x9000, scoped, tag = 'internal scratch']
  %s0 = inlined_call_operand.hbm [shape: f32[2], index: 0, kind: input, shape index: {}]
  %s1 = inlined_call_operand.hbm [shape: f32[8,16], index: 1, kind: input, shape index: {}]
  %s2 = inlined_call_operand.hbm [shape: f32[16,128], index: 2, kind: input, shape index: {}]
  %s3 = inlined_call_operand.hbm [shape: f32[128,128], index: 3, kind: input, shape index: {}]
  %s4 = inlined_call_operand.hbm [shape: f32[128,128], index: 4, kind: input, shape index: {}]
  %s5 = inlined_call_operand.vmem [shape: f32[3,128], index: 5, kind: input, shape index: {}]
  %s6 = inlined_call_operand.hbm [shape: f32[8,128], index: 6, kind: output, shape index: {}]
  %s7 = sld [smem:[#allocation0]]
  $region54: #{tpu_custom_call.1} parent=0
    _
  %s9 = ssub.s32 1, %s7
  %s10 = scalar_select 0, %s9, %s7
  $region1: #{tpu_custom_call.1} parent=0
    #allocation2 [shape = 'u8[512]{0}', space=smem, size = 0x200, scoped, tag = 'input window, operand 0, single buffered']
    #allocation3 [shape = 's32[1]{0}', space=sflag, size = 0x4, scoped, tag = 'scoped memory for tpu_custom_call.1']
    #allocation4 [shape = 's32[1]{0}', space=sflag, size = 0x4, scoped, tag = 'scoped memory for tpu_custom_call.1']
    #allocation5 [shape = 's32[1]{0}', space=sflag, size = 0x4, scoped, tag = 'scoped memory for tpu_custom_call.1']
    #allocation6 [shape = 'u8[4096]{0}', space=vmem, size = 0x1000, scoped, tag = 'input window, operand 1, single buffered']
    #allocation7 [shape = 'u8[8192]{0}', space=vmem, size = 0x2000, scoped, tag = 'input window, operand 2, single buffered']
    #allocation8 [shape = 's32[1]{0}', space=sflag, size = 0x4, scoped, tag = 'scoped memory for tpu_custom_call.1']
    #allocation9 [shape = 'u8[65536]{0}', space=vmem, size = 0x10000, scoped, tag = 'input window, operand 3, single buffered']
    #allocation10 [shape = 'u8[65536]{0}', space=vmem, size = 0x10000, scoped, tag = 'input window, operand 4, single buffered']
    #allocation11 [shape = 's32[1]{0}', space=sflag, size = 0x4, scoped, tag = 'scoped memory for tpu_custom_call.1']
    #allocation12 [shape = 'u8[4096]{0}', space=vmem, size = 0x1000, scoped, tag = 'output window, operand 0, single buffered']
    %11 = vsyncpa [#allocation5], 0
    %12 = vsyncpa [#allocation3], 0
    %13 = vsyncpa [#allocation8], 0
    %14 = vsyncpa [#allocation11], 0
    %15 = vsyncpa [#allocation4], 0
    // Predicated region
    $region2: #{tpu_custom_call.1} parent=1 // pred_check
      _
    $region3: #{tpu_custom_call.1} parent=1 // pred_check_branch
      %17 = sbr.rel (0) target = $region5
    $region4: #{tpu_custom_call.1} parent=1 // pred_region
      %19 = vsyncadd [#allocation5], 0
      %s21 = sshll.u32 %s0, 4
      %s22 = int_to_ptr.hbm [resolvable:$true] %s21
      %24 = dma.hbm_to_smem %s22, 16, [#allocation2], [#allocation5]
    $region5: #{tpu_custom_call.1} parent=1 // pred_fallthru
      _
    // Predicated region
    $region6: #{tpu_custom_call.1} parent=1 // pred_check
      _
    $region7: #{tpu_custom_call.1} parent=1 // pred_check_branch
      %26 = sbr.rel (0) target = $region9
    $region8: #{tpu_custom_call.1} parent=1 // pred_region
      %28 = vsyncadd [#allocation3], 0
      %s30 = sshll.u32 %s1, 4
      %s31 = int_to_ptr.hbm [resolvable:$true] %s30
      %s32 = sshll.u32 [#allocation6], 4
      %s33 = int_to_ptr.vmem [resolvable:$true] %s32
      %35 = dma.hbm_to_vmem [thread:$0]  %s31, 128, %s33, [#allocation3]
    $region9: #{tpu_custom_call.1} parent=1 // pred_fallthru
      _
    // Predicated region
    $region10: #{tpu_custom_call.1} parent=1 // pred_check
      _
    $region11: #{tpu_custom_call.1} parent=1 // pred_check_branch
      %37 = sbr.rel (0) target = $region13
    $region12: #{tpu_custom_call.1} parent=1 // pred_region
      %39 = vsyncadd [#allocation8], 0
      %s40 = sshll.u32 %s2, 4
      %s41 = int_to_ptr.hbm [resolvable:$true] %s40
      %s42 = sshll.u32 [#allocation7], 4
      %s43 = int_to_ptr.vmem [resolvable:$true] %s42
      %48 = dma.hbm_to_vmem [thread:$0]  %s41, 256, %s43, [#allocation8], 128, 128, 8
    $region13: #{tpu_custom_call.1} parent=1 // pred_fallthru
      _
    // Predicated region
    $region14: #{tpu_custom_call.1} parent=1 // pred_check
      _
    $region15: #{tpu_custom_call.1} parent=1 // pred_check_branch
      %50 = sbr.rel (0) target = $region17
    $region16: #{tpu_custom_call.1} parent=1 // pred_region
      %52 = vsyncadd [#allocation8], 0
      %s53 = sshll.u32 %s3, 4
      %s54 = int_to_ptr.hbm [resolvable:$true] %s53
      %s55 = sshll.u32 [#allocation9], 4
      %s56 = int_to_ptr.vmem [resolvable:$true] %s55
      %61 = dma.hbm_to_vmem [thread:$0]  %s54, 2048, %s56, [#allocation8], 128, 128, 8
    $region17: #{tpu_custom_call.1} parent=1 // pred_fallthru
      _
    // Predicated region
    $region18: #{tpu_custom_call.1} parent=1 // pred_check
      _
    $region19: #{tpu_custom_call.1} parent=1 // pred_check_branch
      %63 = sbr.rel (0) target = $region21
    $region20: #{tpu_custom_call.1} parent=1 // pred_region
      %65 = vsyncadd [#allocation11], 0
      %s66 = sshll.u32 %s4, 4
      %s67 = int_to_ptr.hbm [resolvable:$true] %s66
      %s68 = sshll.u32 [#allocation10], 4
      %s69 = int_to_ptr.vmem [resolvable:$true] %s68
      %74 = dma.hbm_to_vmem [thread:$0]  %s67, 2048, %s69, [#allocation11], 128, 128, 8
    $region21: #{tpu_custom_call.1} parent=1 // pred_fallthru
      _
    // Predicated region
    $region22: #{tpu_custom_call.1} parent=1 // pred_check
      _
    $region23: #{tpu_custom_call.1} parent=1 // pred_check_branch
      %76 = sbr.rel (0) target = $region25
    $region24: #{tpu_custom_call.1} parent=1 // pred_region
      _
    $region25: #{tpu_custom_call.1} parent=1 // pred_fallthru
      _
    // Predicated region
    $region26: #{tpu_custom_call.1} parent=1 // pred_check
      _
    $region27: #{tpu_custom_call.1} parent=1 // pred_check_branch
      %78 = sbr.rel (0) target = $region29
    $region28: #{tpu_custom_call.1} parent=1 // pred_region
      %80 = dma.done [#allocation5], 16
    $region29: #{tpu_custom_call.1} parent=1 // pred_fallthru
      _
    // Predicated region
    $region30: #{tpu_custom_call.1} parent=1 // pred_check
      _
    $region31: #{tpu_custom_call.1} parent=1 // pred_check_branch
      %82 = sbr.rel (0) target = $region33
    $region32: #{tpu_custom_call.1} parent=1 // pred_region
      %84 = dma.done [#allocation3], 128
    $region33: #{tpu_custom_call.1} parent=1 // pred_fallthru
      _
    // Predicated region
    $region34: #{tpu_custom_call.1} parent=1 // pred_check
      _
    $region35: #{tpu_custom_call.1} parent=1 // pred_check_branch
      %86 = sbr.rel (0) target = $region37
    $region36: #{tpu_custom_call.1} parent=1 // pred_region
      %88 = dma.done [#allocation8], 256
    $region37: #{tpu_custom_call.1} parent=1 // pred_fallthru
      _
    // Predicated region
    $region38: #{tpu_custom_call.1} parent=1 // pred_check
      _
    $region39: #{tpu_custom_call.1} parent=1 // pred_check_branch
      %90 = sbr.rel (0) target = $region41
    $region40: #{tpu_custom_call.1} parent=1 // pred_region
      %92 = dma.done [#allocation8], 2048
    $region41: #{tpu_custom_call.1} parent=1 // pred_fallthru
      _
    // Predicated region
    $region42: #{tpu_custom_call.1} parent=1 // pred_check
      _
    $region43: #{tpu_custom_call.1} parent=1 // pred_check_branch
      %94 = sbr.rel (0) target = $region45
    $region44: #{tpu_custom_call.1} parent=1 // pred_region
      %96 = dma.done [#allocation11], 2048
    $region45: #{tpu_custom_call.1} parent=1 // pred_fallthru
      _
    %97 = sfence
    %v98 = vld [vmem:[#allocation6] sm:$0xff]
    %v99 = vmul.f32 %v98, %v98
    %vm100 = vcmask 130048
    %v101 = vsel %vm100, %v99, 0.0
    %102 = vadd.xlane.f32.xlu0 %v101
    %v103 = vpop.xlane.xlu0 %102
    %v104 = vmax.f32 %v103, 1e-24
    %v105 = vrsqrt.pop %v104
    %v106 = vmul.f32 %v105, %v104
    %v107 = vmul.f32 %v106, %v105
    %v108 = vmul.f32 0.5, %v107
    %v109 = vsub.f32 1.5, %v108
    %v110 = vmul.f32 %v105, %v109
    %vm111 = vweird.f32 %v104
    %vm112 = vweird.f32 %v105
    %vm113 = vmor %vm111, %vm112
    %v114 = vsel %vm113, %v105, %v110
    %v115 = vmul.f32 %v98, %v114
    %s116 = sld [smem:[#allocation2]]
    %s117 = sld [smem:[#allocation2 + $0x1]]
    %v118 = vld [vmem:[#allocation7] sm:$0xff]
    %v119 = vld [vmem:[#allocation7 + $0x8] sm:$0xff]
    %v120 = vld [vmem:[%s5] sm:$0x1]
    %v121 = vperm.slane %v120, 0
    %v123 = vsel %vm100, %v115, 0
    %125 = vmatpush.msra.mxu0 0.0
    %126 = vmatpush.msra.mxu0 0.0
    %127 = vmatpush.msra.mxu0 0.0
    %128 = vmatpush.msra.mxu0 0.0
    %129 = vmatpush.msra.mxu0 0.0
    %130 = vmatpush.msra.mxu0 0.0
    %131 = vmatpush.msra.mxu0 0.0
    %132 = vmatpush.msra.mxu0 0.0
    %133 = vmatpush.msra.mxu0 0.0
    %134 = vmatpush.msra.mxu0 0.0
    %135 = vmatpush.msra.mxu0 0.0
    %136 = vmatpush.msra.mxu0 0.0
    %137 = vmatpush.msra.mxu0 0.0
    %138 = vmatpush.msra.mxu0 0.0
    %139 = vmatpush.msra.mxu0 %v119
    %140 = vmatpush.msra.mxu0 %v118
    %141 = vmatmul.f32.gmra.mxu0 %v123
    %v142 = vpop.f32.mrf.mxu0
    %v143 = vadd.f32 %v121, %v142
    %144 = vdwg.mxu0
    %vm145 = vcmp.ge.f32.partialorder %v143, 0.0
    %v146 = vstv %s116
    %v147 = vmul.f32 %v146, %v143
    %v148 = vsel %vm145, %v143, %v147
    %v149 = vld [vmem:[#allocation9] sm:$0xff]
    %v150 = vld [vmem:[#allocation9 + $0x8] sm:$0xff]
    %v151 = vld [vmem:[#allocation9 + $0x10] sm:$0xff]
    %v152 = vld [vmem:[#allocation9 + $0x18] sm:$0xff]
    %v153 = vld [vmem:[#allocation9 + $0x20] sm:$0xff]
    %v154 = vld [vmem:[#allocation9 + $0x28] sm:$0xff]
    %v155 = vld [vmem:[#allocation9 + $0x30] sm:$0xff]
    %v156 = vld [vmem:[#allocation9 + $0x38] sm:$0xff]
    %v157 = vld [vmem:[#allocation9 + $0x40] sm:$0xff]
    %v158 = vld [vmem:[#allocation9 + $0x48] sm:$0xff]
    %v159 = vld [vmem:[#allocation9 + $0x50] sm:$0xff]
    %v160 = vld [vmem:[#allocation9 + $0x58] sm:$0xff]
    %v161 = vld [vmem:[#allocation9 + $0x60] sm:$0xff]
    %v162 = vld [vmem:[#allocation9 + $0x68] sm:$0xff]
    %v163 = vld [vmem:[#allocation9 + $0x70] sm:$0xff]
    %v164 = vld [vmem:[#allocation9 + $0x78] sm:$0xff]
    %v165 = vld [vmem:[%s5 + $0x1] sm:$0x1]
    %v166 = vperm.slane %v165, 0
    %167 = vmatpush.msra.mxu0 %v164
    %168 = vmatpush.msra.mxu0 %v163
    %169 = vmatpush.msra.mxu0 %v162
    %170 = vmatpush.msra.mxu0 %v161
    %171 = vmatpush.msra.mxu0 %v160
    %172 = vmatpush.msra.mxu0 %v159
    %173 = vmatpush.msra.mxu0 %v158
    %174 = vmatpush.msra.mxu0 %v157
    %175 = vmatpush.msra.mxu0 %v156
    %176 = vmatpush.msra.mxu0 %v155
    %177 = vmatpush.msra.mxu0 %v154
    %178 = vmatpush.msra.mxu0 %v153
    %179 = vmatpush.msra.mxu0 %v152
    %180 = vmatpush.msra.mxu0 %v151
    %181 = vmatpush.msra.mxu0 %v150
    %182 = vmatpush.msra.mxu0 %v149
    %183 = vmatmul.f32.gmra.mxu0 %v148
    %v184 = vpop.f32.mrf.mxu0
    %v185 = vadd.f32 %v166, %v184
    %186 = vdwg.mxu0
    %vm187 = vcmp.ge.f32.partialorder %v185, 0.0
    %v188 = vstv %s117
    %v189 = vmul.f32 %v188, %v185
    %v190 = vsel %vm187, %v185, %v189
    %v191 = vld [vmem:[#allocation10] sm:$0xff]
    %v192 = vld [vmem:[#allocation10 + $0x8] sm:$0xff]
    %v193 = vld [vmem:[#allocation10 + $0x10] sm:$0xff]
    %v194 = vld [vmem:[#allocation10 + $0x18] sm:$0xff]
    %v195 = vld [vmem:[#allocation10 + $0x20] sm:$0xff]
    %v196 = vld [vmem:[#allocation10 + $0x28] sm:$0xff]
    %v197 = vld [vmem:[#allocation10 + $0x30] sm:$0xff]
    %v198 = vld [vmem:[#allocation10 + $0x38] sm:$0xff]
    %v199 = vld [vmem:[#allocation10 + $0x40] sm:$0xff]
    %v200 = vld [vmem:[#allocation10 + $0x48] sm:$0xff]
    %v201 = vld [vmem:[#allocation10 + $0x50] sm:$0xff]
    %v202 = vld [vmem:[#allocation10 + $0x58] sm:$0xff]
    %v203 = vld [vmem:[#allocation10 + $0x60] sm:$0xff]
    %v204 = vld [vmem:[#allocation10 + $0x68] sm:$0xff]
    %v205 = vld [vmem:[#allocation10 + $0x70] sm:$0xff]
    %v206 = vld [vmem:[#allocation10 + $0x78] sm:$0xff]
    %v207 = vld [vmem:[%s5 + $0x2] sm:$0x1]
    %v208 = vperm.slane %v207, 0
    %209 = vmatpush.msra.mxu0 %v206
    %210 = vmatpush.msra.mxu0 %v205
    %211 = vmatpush.msra.mxu0 %v204
    %212 = vmatpush.msra.mxu0 %v203
    %213 = vmatpush.msra.mxu0 %v202
    %214 = vmatpush.msra.mxu0 %v201
    %215 = vmatpush.msra.mxu0 %v200
    %216 = vmatpush.msra.mxu0 %v199
    %217 = vmatpush.msra.mxu0 %v198
    %218 = vmatpush.msra.mxu0 %v197
    %219 = vmatpush.msra.mxu0 %v196
    %220 = vmatpush.msra.mxu0 %v195
    %221 = vmatpush.msra.mxu0 %v194
    %222 = vmatpush.msra.mxu0 %v193
    %223 = vmatpush.msra.mxu0 %v192
    %224 = vmatpush.msra.mxu0 %v191
    %225 = vmatmul.f32.gmra.mxu0 %v190
    %v226 = vpop.f32.mrf.mxu0
    %v227 = vadd.f32 %v208, %v226
    %228 = vdwg.mxu0
    %229 = vst [vmem:[#allocation12] sm:$0xff] %v227
    // Predicated region
    $region46: #{tpu_custom_call.1} parent=1 // pred_check
      _
    $region47: #{tpu_custom_call.1} parent=1 // pred_check_branch
      %231 = sbr.rel (0) target = $region49
    $region48: #{tpu_custom_call.1} parent=1 // pred_region
      %233 = vsyncadd [#allocation4], 0
      %s235 = sshll.u32 [#allocation12], 4
      %s236 = int_to_ptr.vmem [resolvable:$true] %s235
      %s237 = sshll.u32 %s6, 4
      %s238 = int_to_ptr.hbm [resolvable:$true] %s237
      %240 = dma.vmem_to_hbm [thread:$0]  %s236, 128, %s238, [#allocation4]
    $region49: #{tpu_custom_call.1} parent=1 // pred_fallthru
      _
    // Predicated region
    $region50: #{tpu_custom_call.1} parent=1 // pred_check
      _
    $region51: #{tpu_custom_call.1} parent=1 // pred_check_branch
      %242 = sbr.rel (0) target = $region53
    $region52: #{tpu_custom_call.1} parent=1 // pred_region
      %244 = dma.done [#allocation4], 128
    $region53: #{tpu_custom_call.1} parent=1 // pred_fallthru
      _
    %245 = vsyncpa [#allocation3], 1
    %246 = vsyncpa [#allocation8], 1
    %247 = vsyncpa [#allocation11], 1
    %248 = vsyncpa [#allocation4], 1
    %249 = vsyncpa [#allocation5], 1

</llo_original>
